<compile_context>
chip_gen: v7x
topology: tpu7x:2x2x1
jax: 0.10.0
libtpu: 0.0.40
codegen_flags: <defaults>
</compile_context>

<pallas_src>
import functools

import jax
import jax.numpy as jnp
import numpy as np
from jax.experimental import pallas as pl
from jax.experimental.pallas import tpu as pltpu


# ----------------------------------------------------------------------------
# Fused kernel: (folded-mean tensor linear map) + over_opacity_extra composite.
# All arrays carry rays on the last (lane) axis.
# ----------------------------------------------------------------------------
def _fused_tensor_reduce_kernel(x_ref, w_ref, b_ref, o_ref, *, density_factor,
                                white_background):
    # x_ref: (P, D_in, tb)  per-partition features, rays on lanes
    # w_ref: (C, D_in)      mean-over-tensors weights (transposed), C = F + 1
    # b_ref: (C, 1)         mean-over-tensors bias
    # o_ref: (F, tb)        composited rgb, rays on lanes
    P, D, tb = x_ref.shape
    C = w_ref.shape[0]
    F = C - 1

    w = w_ref[...]                                              # (C, D)
    bias = jnp.broadcast_to(b_ref[...], (C, tb))                # hoisted once

    # Per-partition rgba (C, tb) and per-partition sample distance (1, tb).
    # P is small and static -> static unroll.
    rgba = []
    dist = []
    for p in range(P):
        xp = x_ref[p]                                           # (D, tb)
        rgba.append(jnp.dot(w, xp, preferred_element_type=jnp.float32) + bias)
        dist.append(xp[D - 1:D, :])                             # last feature = distance

    # over_opacity_extra + over_composite_one: running exclusive cumprod over P.
    trans = jnp.ones((1, tb), jnp.float32)
    acc = jnp.zeros((F, tb), jnp.float32)
    accum = jnp.zeros((1, tb), jnp.float32)
    for j in range(P):                                          # static unroll
        rgb_j = jax.nn.sigmoid(rgba[j][:F, :])                  # (F, tb)
        dens_j = rgba[j][F:C, :]                                # (1, tb)
        d_j = dist[j]
        dens_j = jnp.where(d_j < 1e-5, jnp.zeros_like(dens_j), dens_j)
        dens_j = jnp.maximum(dens_j, 0.0) * density_factor
        if j < P - 1:
            delta_j = jnp.abs(dist[j + 1] - d_j)
        else:
            delta_j = jnp.full_like(d_j, 1e4)
        a_j = 1.0 - jnp.exp(-delta_j * dens_j)
        w_j = a_j * trans
        acc = acc + w_j * rgb_j
        accum = accum + w_j
        trans = trans * (1.0 - a_j + 1e-8)
    if white_background:
        acc = acc + (1.0 - accum)
    o_ref[...] = acc


# ----------------------------------------------------------------------------
# TensorReduce.forward glue: layout plumbing (wrapper-side) + one pallas_call.
# ----------------------------------------------------------------------------
def tensor_reduce_forward(points, distances, W, b, *, num_partitions,
                          density_factor=1.0, white_background=False,
                          ray_block=128):
    assert ray_block % 128 == 0, "ray tile must be lane-dense (multiple of 128)"
    B = points.shape[0]
    P = num_partitions

    # x = [xyz | distance] flattened per ray, then split into P partitions.
    x = jnp.concatenate(
        [points.reshape(B, -1, 3), distances.reshape(B, -1, 1)], -1
    ).reshape(B, -1)                                            # (B, 4*S)
    D_in = x.shape[-1] // P
    x = x.reshape(B, P, D_in)
    x_t = jnp.transpose(x, (1, 2, 0))                           # (P, D_in, B) rays on lanes

    # Fold the mean over the T tensors into the weights (exact: the reduce is linear).
    W_mean_T = jnp.mean(W, axis=0).T                            # (C, D_in)
    b_mean = jnp.mean(b, axis=0).T                              # (C, 1)
    C = W_mean_T.shape[0]
    F = C - 1

    # Pad rays to a multiple of ray_block (padded rays produce finite values, dropped below).
    Bp = ((B + ray_block - 1) // ray_block) * ray_block
    if Bp != B:
        x_t = jnp.pad(x_t, ((0, 0), (0, 0), (0, Bp - B)))

    kern = functools.partial(_fused_tensor_reduce_kernel,
                             density_factor=density_factor,
                             white_background=white_background)
    out_t = pl.pallas_call(
        kern,
        out_shape=jax.ShapeDtypeStruct((F, Bp), jnp.float32),
        grid=(Bp // ray_block,),
        in_specs=[
            pl.BlockSpec((P, D_in, ray_block), lambda i: (0, 0, i)),
            pl.BlockSpec((C, D_in), lambda i: (0, 0)),
            pl.BlockSpec((C, 1), lambda i: (0, 0)),
        ],
        out_specs=pl.BlockSpec((F, ray_block), lambda i: (0, i)),
        compiler_params=pltpu.CompilerParams(dimension_semantics=("parallel",)),
    )(x_t, W_mean_T, b_mean)

    rgb_map = out_t[:, :B].T                                    # (B, F); activation = identity
    return rgb_map


# ----------------------------------------------------------------------------
# Pure-JAX reference (mirrors the PyTorch math) for a correctness check.
# ----------------------------------------------------------------------------
def reference_forward(points, distances, W, b, *, num_partitions,
                      density_factor=1.0, white_background=False):
    B = points.shape[0]
    P = num_partitions
    T = W.shape[0]
    x = jnp.concatenate(
        [points.reshape(B, -1, 3), distances.reshape(B, -1, 1)], -1
    ).reshape(B, -1)
    xp = x.reshape(-1, x.shape[-1] // P)
    outs, ops = [], []
    for t in range(T):
        o = xp @ W[t] + b[t][0]
        outs.append(o[..., :-1])
        ops.append(o[..., -1:])
    outputs = jnp.stack(outs, 1)
    opac = jnp.stack(ops, 1)
    outputs = outputs.reshape(B, P, -1, outputs.shape[-1]).mean(-2)
    opac = opac.reshape(B, P, -1, 1).mean(-2)
    outputs = jnp.concatenate([outputs, opac], -1)
    dist = xp.reshape(B, P, -1)[..., -1]
    rgb = jax.nn.sigmoid(outputs[..., :-1])
    density = outputs[..., -1]
    density = jnp.where(dist < 1e-5, 0.0, density)
    density = jnp.maximum(density, 0.0) * density_factor
    deltas = jnp.concatenate(
        [jnp.abs(dist[:, 1:] - dist[:, :-1]), 1e4 * jnp.ones_like(dist[:, :1])], 1)
    alpha = 1.0 - jnp.exp(-deltas * density)
    alphas_shifted = jnp.concatenate(
        [jnp.ones_like(alpha[:, :1]), 1.0 - alpha + 1e-8], -1)
    weights = alpha * jnp.cumprod(alphas_shifted, -1)[:, :-1]
    rgb_final = jnp.sum(weights[..., None] * rgb, -2)
    if white_background:
        rgb_final = rgb_final + (1.0 - weights.sum(-1, keepdims=True))
    return rgb_final


if __name__ == "__main__":
    B, S = 256, 16        # rays, samples per ray (256 rays -> 2 parallel grid steps)
    P, T, F = 4, 2, 3     # num_partitions, num_tensors, out_feature_dim
    D_in = (4 * S) // P   # per-partition flattened features (xyz + distance)
    C = F + 1             # tensor_out_channels (features + opacity)

    key = jax.random.PRNGKey(0)
    kp, kw, kb = jax.random.split(key, 3)

    points = jax.random.normal(kp, (B, S, 3), jnp.float32)
    distances = jnp.broadcast_to(
        jnp.linspace(0.1, 2.0, S, dtype=jnp.float32)[None, :, None], (B, S, 1))

    # Deterministic synthetic parameters for the T tensor sub-modules.
    W = 0.1 * jax.random.normal(kw, (T, D_in, C), jnp.float32)
    b = 0.1 * jax.random.normal(kb, (T, 1, C), jnp.float32)

    out = tensor_reduce_forward(points, distances, W, b, num_partitions=P,
                                density_factor=1.0, white_background=False,
                                ray_block=128)
    out = jax.block_until_ready(out)

    ref = reference_forward(points, distances, W, b, num_partitions=P,
                            density_factor=1.0, white_background=False)
    np.testing.assert_allclose(np.asarray(out), np.asarray(ref),
                               rtol=1e-5, atol=2e-5)
    assert out.shape == (B, F)
    print("KERNEL_OK")
</pallas_src>

<mosaic_0001>
module attributes {stable_mosaic.version = 11 : i64} {
  func.func @_fused_tensor_reduce_kernel(%arg0: i32, %arg1: memref<4x16x128xf32, #tpu.memory_space<vmem>>, %arg2: memref<4x16xf32, #tpu.memory_space<vmem>>, %arg3: memref<4x1xf32, #tpu.memory_space<vmem>>, %arg4: memref<3x128xf32, #tpu.memory_space<vmem>>) attributes {dimension_semantics = [#tpu.dimension_semantics<parallel>], iteration_bounds = array<i64: 2>, scalar_prefetch = 0 : i64, scratch_operands = 0 : i64, tpu.core_type = #tpu.core_type<tc>, window_params = [{transform_indices = @transform_0, window_bounds = array<i64: 4, 16, 128>}, {pipeline_mode = #tpu.pipeline_mode<synchronous>, transform_indices = @transform_1, window_bounds = array<i64: 4, 16>}, {pipeline_mode = #tpu.pipeline_mode<synchronous>, transform_indices = @transform_2, window_bounds = array<i64: 4, 1>}, {transform_indices = @transform_3, window_bounds = array<i64: 3, 128>}]} {
    %c0 = arith.constant 0 : index
    %c0_0 = arith.constant 0 : index
    %0 = vector.load %arg2[%c0, %c0_0] : memref<4x16xf32, #tpu.memory_space<vmem>>, vector<4x16xf32>
    %c0_1 = arith.constant 0 : index
    %c0_2 = arith.constant 0 : index
    %1 = vector.load %arg3[%c0_1, %c0_2] : memref<4x1xf32, #tpu.memory_space<vmem>>, vector<4x1xf32>
    %2 = vector.shape_cast %1 : vector<4x1xf32> to vector<4x1xf32>
    %3 = vector.broadcast %2 : vector<4x1xf32> to vector<4x128xf32>
    %c0_3 = arith.constant 0 : index
    %c0_4 = arith.constant 0 : index
    %c0_5 = arith.constant 0 : index
    %4 = vector.load %arg1[%c0_3, %c0_4, %c0_5] : memref<4x16x128xf32, #tpu.memory_space<vmem>>, vector<1x16x128xf32>
    %5 = vector.shape_cast %4 : vector<1x16x128xf32> to vector<16x128xf32>
    %cst = arith.constant dense<0.000000e+00> : vector<4x128xf32>
    %6 = tpu.matmul %0, %5, %cst {dimension_numbers = #tpu.dot_dimension_numbers<[1], [0], [0], [1], [0, 0, 1, 1], [], []>} : vector<4x16xf32>, vector<16x128xf32>, vector<4x128xf32> -> vector<4x128xf32>
    %7 = arith.addf %6, %3 : vector<4x128xf32>
    %8 = vector.extract_strided_slice %5 {offsets = [15, 0], sizes = [1, 128], strides = [1, 1]} : vector<16x128xf32> to vector<1x128xf32>
    %c1 = arith.constant 1 : index
    %c0_6 = arith.constant 0 : index
    %c0_7 = arith.constant 0 : index
    %9 = vector.load %arg1[%c1, %c0_6, %c0_7] : memref<4x16x128xf32, #tpu.memory_space<vmem>>, vector<1x16x128xf32>
    %10 = vector.shape_cast %9 : vector<1x16x128xf32> to vector<16x128xf32>
    %cst_8 = arith.constant dense<0.000000e+00> : vector<4x128xf32>
    %11 = tpu.matmul %0, %10, %cst_8 {dimension_numbers = #tpu.dot_dimension_numbers<[1], [0], [0], [1], [0, 0, 1, 1], [], []>} : vector<4x16xf32>, vector<16x128xf32>, vector<4x128xf32> -> vector<4x128xf32>
    %12 = arith.addf %11, %3 : vector<4x128xf32>
    %13 = vector.extract_strided_slice %10 {offsets = [15, 0], sizes = [1, 128], strides = [1, 1]} : vector<16x128xf32> to vector<1x128xf32>
    %c2 = arith.constant 2 : index
    %c0_9 = arith.constant 0 : index
    %c0_10 = arith.constant 0 : index
    %14 = vector.load %arg1[%c2, %c0_9, %c0_10] : memref<4x16x128xf32, #tpu.memory_space<vmem>>, vector<1x16x128xf32>
    %15 = vector.shape_cast %14 : vector<1x16x128xf32> to vector<16x128xf32>
    %cst_11 = arith.constant dense<0.000000e+00> : vector<4x128xf32>
    %16 = tpu.matmul %0, %15, %cst_11 {dimension_numbers = #tpu.dot_dimension_numbers<[1], [0], [0], [1], [0, 0, 1, 1], [], []>} : vector<4x16xf32>, vector<16x128xf32>, vector<4x128xf32> -> vector<4x128xf32>
    %17 = arith.addf %16, %3 : vector<4x128xf32>
    %18 = vector.extract_strided_slice %15 {offsets = [15, 0], sizes = [1, 128], strides = [1, 1]} : vector<16x128xf32> to vector<1x128xf32>
    %c3 = arith.constant 3 : index
    %c0_12 = arith.constant 0 : index
    %c0_13 = arith.constant 0 : index
    %19 = vector.load %arg1[%c3, %c0_12, %c0_13] : memref<4x16x128xf32, #tpu.memory_space<vmem>>, vector<1x16x128xf32>
    %20 = vector.shape_cast %19 : vector<1x16x128xf32> to vector<16x128xf32>
    %cst_14 = arith.constant dense<0.000000e+00> : vector<4x128xf32>
    %21 = tpu.matmul %0, %20, %cst_14 {dimension_numbers = #tpu.dot_dimension_numbers<[1], [0], [0], [1], [0, 0, 1, 1], [], []>} : vector<4x16xf32>, vector<16x128xf32>, vector<4x128xf32> -> vector<4x128xf32>
    %22 = arith.addf %21, %3 : vector<4x128xf32>
    %23 = vector.extract_strided_slice %20 {offsets = [15, 0], sizes = [1, 128], strides = [1, 1]} : vector<16x128xf32> to vector<1x128xf32>
    %cst_15 = arith.constant 1.000000e+00 : f32
    %24 = vector.broadcast %cst_15 : f32 to vector<1x128xf32>
    %cst_16 = arith.constant 0.000000e+00 : f32
    %25 = vector.broadcast %cst_16 : f32 to vector<3x128xf32>
    %26 = vector.extract_strided_slice %7 {offsets = [0, 0], sizes = [3, 128], strides = [1, 1]} : vector<4x128xf32> to vector<3x128xf32>
    %27 = arith.negf %26 : vector<3x128xf32>
    %28 = math.exp %27 : vector<3x128xf32>
    %cst_17 = arith.constant 1.000000e+00 : f32
    %29 = vector.broadcast %cst_17 : f32 to vector<3x128xf32>
    %30 = arith.addf %29, %28 : vector<3x128xf32>
    %31 = arith.divf %29, %30 : vector<3x128xf32>
    %32 = vector.extract_strided_slice %7 {offsets = [3, 0], sizes = [1, 128], strides = [1, 1]} : vector<4x128xf32> to vector<1x128xf32>
    %cst_18 = arith.constant 9.99999974E-6 : f32
    %33 = vector.broadcast %cst_18 : f32 to vector<1x128xf32>
    %34 = arith.cmpf olt, %8, %33 : vector<1x128xf32>
    %cst_19 = arith.constant 0.000000e+00 : f32
    %35 = vector.broadcast %cst_19 : f32 to vector<1x128xf32>
    %36 = arith.select %34, %35, %32 : vector<1x128xi1>, vector<1x128xf32>
    %cst_20 = arith.constant 0.000000e+00 : f32
    %37 = vector.broadcast %cst_20 : f32 to vector<1x128xf32>
    %38 = arith.maximumf %36, %37 : vector<1x128xf32>
    %cst_21 = arith.constant 1.000000e+00 : f32
    %39 = vector.broadcast %cst_21 : f32 to vector<1x128xf32>
    %40 = arith.mulf %38, %39 : vector<1x128xf32>
    %41 = arith.subf %13, %8 : vector<1x128xf32>
    %42 = math.absf %41 : vector<1x128xf32>
    %cst_22 = arith.constant 0.000000e+00 : f32
    %43 = vector.broadcast %cst_22 : f32 to vector<1x128xf32>
    %44 = arith.subf %43, %42 : vector<1x128xf32>
    %45 = arith.mulf %44, %40 : vector<1x128xf32>
    %46 = math.exp %45 : vector<1x128xf32>
    %cst_23 = arith.constant 1.000000e+00 : f32
    %47 = vector.broadcast %cst_23 : f32 to vector<1x128xf32>
    %48 = arith.subf %47, %46 : vector<1x128xf32>
    %49 = arith.mulf %48, %24 : vector<1x128xf32>
    %50 = vector.broadcast %49 : vector<1x128xf32> to vector<3x128xf32>
    %51 = arith.mulf %50, %31 : vector<3x128xf32>
    %52 = arith.addf %25, %51 : vector<3x128xf32>
    %cst_24 = arith.constant 1.000000e+00 : f32
    %53 = vector.broadcast %cst_24 : f32 to vector<1x128xf32>
    %54 = arith.subf %53, %48 : vector<1x128xf32>
    %cst_25 = arith.constant 9.99999993E-9 : f32
    %55 = vector.broadcast %cst_25 : f32 to vector<1x128xf32>
    %56 = arith.addf %54, %55 : vector<1x128xf32>
    %57 = arith.mulf %24, %56 : vector<1x128xf32>
    %58 = vector.extract_strided_slice %12 {offsets = [0, 0], sizes = [3, 128], strides = [1, 1]} : vector<4x128xf32> to vector<3x128xf32>
    %59 = arith.negf %58 : vector<3x128xf32>
    %60 = math.exp %59 : vector<3x128xf32>
    %cst_26 = arith.constant 1.000000e+00 : f32
    %61 = vector.broadcast %cst_26 : f32 to vector<3x128xf32>
    %62 = arith.addf %61, %60 : vector<3x128xf32>
    %63 = arith.divf %61, %62 : vector<3x128xf32>
    %64 = vector.extract_strided_slice %12 {offsets = [3, 0], sizes = [1, 128], strides = [1, 1]} : vector<4x128xf32> to vector<1x128xf32>
    %cst_27 = arith.constant 9.99999974E-6 : f32
    %65 = vector.broadcast %cst_27 : f32 to vector<1x128xf32>
    %66 = arith.cmpf olt, %13, %65 : vector<1x128xf32>
    %cst_28 = arith.constant 0.000000e+00 : f32
    %67 = vector.broadcast %cst_28 : f32 to vector<1x128xf32>
    %68 = arith.select %66, %67, %64 : vector<1x128xi1>, vector<1x128xf32>
    %cst_29 = arith.constant 0.000000e+00 : f32
    %69 = vector.broadcast %cst_29 : f32 to vector<1x128xf32>
    %70 = arith.maximumf %68, %69 : vector<1x128xf32>
    %cst_30 = arith.constant 1.000000e+00 : f32
    %71 = vector.broadcast %cst_30 : f32 to vector<1x128xf32>
    %72 = arith.mulf %70, %71 : vector<1x128xf32>
    %73 = arith.subf %18, %13 : vector<1x128xf32>
    %74 = math.absf %73 : vector<1x128xf32>
    %cst_31 = arith.constant 0.000000e+00 : f32
    %75 = vector.broadcast %cst_31 : f32 to vector<1x128xf32>
    %76 = arith.subf %75, %74 : vector<1x128xf32>
    %77 = arith.mulf %76, %72 : vector<1x128xf32>
    %78 = math.exp %77 : vector<1x128xf32>
    %cst_32 = arith.constant 1.000000e+00 : f32
    %79 = vector.broadcast %cst_32 : f32 to vector<1x128xf32>
    %80 = arith.subf %79, %78 : vector<1x128xf32>
    %81 = arith.mulf %80, %57 : vector<1x128xf32>
    %82 = vector.broadcast %81 : vector<1x128xf32> to vector<3x128xf32>
    %83 = arith.mulf %82, %63 : vector<3x128xf32>
    %84 = arith.addf %52, %83 : vector<3x128xf32>
    %cst_33 = arith.constant 1.000000e+00 : f32
    %85 = vector.broadcast %cst_33 : f32 to vector<1x128xf32>
    %86 = arith.subf %85, %80 : vector<1x128xf32>
    %cst_34 = arith.constant 9.99999993E-9 : f32
    %87 = vector.broadcast %cst_34 : f32 to vector<1x128xf32>
    %88 = arith.addf %86, %87 : vector<1x128xf32>
    %89 = arith.mulf %57, %88 : vector<1x128xf32>
    %90 = vector.extract_strided_slice %17 {offsets = [0, 0], sizes = [3, 128], strides = [1, 1]} : vector<4x128xf32> to vector<3x128xf32>
    %91 = arith.negf %90 : vector<3x128xf32>
    %92 = math.exp %91 : vector<3x128xf32>
    %cst_35 = arith.constant 1.000000e+00 : f32
    %93 = vector.broadcast %cst_35 : f32 to vector<3x128xf32>
    %94 = arith.addf %93, %92 : vector<3x128xf32>
    %95 = arith.divf %93, %94 : vector<3x128xf32>
    %96 = vector.extract_strided_slice %17 {offsets = [3, 0], sizes = [1, 128], strides = [1, 1]} : vector<4x128xf32> to vector<1x128xf32>
    %cst_36 = arith.constant 9.99999974E-6 : f32
    %97 = vector.broadcast %cst_36 : f32 to vector<1x128xf32>
    %98 = arith.cmpf olt, %18, %97 : vector<1x128xf32>
    %cst_37 = arith.constant 0.000000e+00 : f32
    %99 = vector.broadcast %cst_37 : f32 to vector<1x128xf32>
    %100 = arith.select %98, %99, %96 : vector<1x128xi1>, vector<1x128xf32>
    %cst_38 = arith.constant 0.000000e+00 : f32
    %101 = vector.broadcast %cst_38 : f32 to vector<1x128xf32>
    %102 = arith.maximumf %100, %101 : vector<1x128xf32>
    %cst_39 = arith.constant 1.000000e+00 : f32
    %103 = vector.broadcast %cst_39 : f32 to vector<1x128xf32>
    %104 = arith.mulf %102, %103 : vector<1x128xf32>
    %105 = arith.subf %23, %18 : vector<1x128xf32>
    %106 = math.absf %105 : vector<1x128xf32>
    %cst_40 = arith.constant 0.000000e+00 : f32
    %107 = vector.broadcast %cst_40 : f32 to vector<1x128xf32>
    %108 = arith.subf %107, %106 : vector<1x128xf32>
    %109 = arith.mulf %108, %104 : vector<1x128xf32>
    %110 = math.exp %109 : vector<1x128xf32>
    %cst_41 = arith.constant 1.000000e+00 : f32
    %111 = vector.broadcast %cst_41 : f32 to vector<1x128xf32>
    %112 = arith.subf %111, %110 : vector<1x128xf32>
    %113 = arith.mulf %112, %89 : vector<1x128xf32>
    %114 = vector.broadcast %113 : vector<1x128xf32> to vector<3x128xf32>
    %115 = arith.mulf %114, %95 : vector<3x128xf32>
    %116 = arith.addf %84, %115 : vector<3x128xf32>
    %cst_42 = arith.constant 1.000000e+00 : f32
    %117 = vector.broadcast %cst_42 : f32 to vector<1x128xf32>
    %118 = arith.subf %117, %112 : vector<1x128xf32>
    %cst_43 = arith.constant 9.99999993E-9 : f32
    %119 = vector.broadcast %cst_43 : f32 to vector<1x128xf32>
    %120 = arith.addf %118, %119 : vector<1x128xf32>
    %121 = arith.mulf %89, %120 : vector<1x128xf32>
    %122 = vector.extract_strided_slice %22 {offsets = [0, 0], sizes = [3, 128], strides = [1, 1]} : vector<4x128xf32> to vector<3x128xf32>
    %123 = arith.negf %122 : vector<3x128xf32>
    %124 = math.exp %123 : vector<3x128xf32>
    %cst_44 = arith.constant 1.000000e+00 : f32
    %125 = vector.broadcast %cst_44 : f32 to vector<3x128xf32>
    %126 = arith.addf %125, %124 : vector<3x128xf32>
    %127 = arith.divf %125, %126 : vector<3x128xf32>
    %128 = vector.extract_strided_slice %22 {offsets = [3, 0], sizes = [1, 128], strides = [1, 1]} : vector<4x128xf32> to vector<1x128xf32>
    %cst_45 = arith.constant 9.99999974E-6 : f32
    %129 = vector.broadcast %cst_45 : f32 to vector<1x128xf32>
    %130 = arith.cmpf olt, %23, %129 : vector<1x128xf32>
    %cst_46 = arith.constant 0.000000e+00 : f32
    %131 = vector.broadcast %cst_46 : f32 to vector<1x128xf32>
    %132 = arith.select %130, %131, %128 : vector<1x128xi1>, vector<1x128xf32>
    %cst_47 = arith.constant 0.000000e+00 : f32
    %133 = vector.broadcast %cst_47 : f32 to vector<1x128xf32>
    %134 = arith.maximumf %132, %133 : vector<1x128xf32>
    %cst_48 = arith.constant 1.000000e+00 : f32
    %135 = vector.broadcast %cst_48 : f32 to vector<1x128xf32>
    %136 = arith.mulf %134, %135 : vector<1x128xf32>
    %cst_49 = arith.constant 1.000000e+04 : f32
    %137 = vector.broadcast %cst_49 : f32 to vector<1x128xf32>
    %cst_50 = arith.constant 0.000000e+00 : f32
    %138 = vector.broadcast %cst_50 : f32 to vector<1x128xf32>
    %139 = arith.subf %138, %137 : vector<1x128xf32>
    %140 = arith.mulf %139, %136 : vector<1x128xf32>
    %141 = math.exp %140 : vector<1x128xf32>
    %cst_51 = arith.constant 1.000000e+00 : f32
    %142 = vector.broadcast %cst_51 : f32 to vector<1x128xf32>
    %143 = arith.subf %142, %141 : vector<1x128xf32>
    %144 = arith.mulf %143, %121 : vector<1x128xf32>
    %145 = vector.broadcast %144 : vector<1x128xf32> to vector<3x128xf32>
    %146 = arith.mulf %145, %127 : vector<3x128xf32>
    %147 = arith.addf %116, %146 : vector<3x128xf32>
    %c0_52 = arith.constant 0 : index
    %c0_53 = arith.constant 0 : index
    %148 = vector.load %arg4[%c0_52, %c0_53] : memref<3x128xf32, #tpu.memory_space<vmem>>, vector<3x128xf32>
    tpu.vector_store %arg4[%c0_52, %c0_53], %147 {strides = array<i32>} : memref<3x128xf32, #tpu.memory_space<vmem>>, vector<3x128xf32>,
    return
  }
  func.func @transform_0(%arg0: i32) -> (i32, i32, i32) {
    %c0_i32 = arith.constant 0 : i32
    %c0_i32_0 = arith.constant 0 : i32
    %c0_i32_1 = arith.constant 0 : i32
    return %c0_i32, %c0_i32_0, %arg0 : i32, i32, i32
  }
  func.func @transform_1(%arg0: i32) -> (i32, i32) {
    %c0_i32 = arith.constant 0 : i32
    %c0_i32_0 = arith.constant 0 : i32
    %c0_i32_1 = arith.constant 0 : i32
    return %c0_i32, %c0_i32_0 : i32, i32
  }
  func.func @transform_2(%arg0: i32) -> (i32, i32) {
    %c0_i32 = arith.constant 0 : i32
    %c0_i32_0 = arith.constant 0 : i32
    %c0_i32_1 = arith.constant 0 : i32
    return %c0_i32, %c0_i32_0 : i32, i32
  }
  func.func @transform_3(%arg0: i32) -> (i32, i32) {
    %c0_i32 = arith.constant 0 : i32
    %c0_i32_0 = arith.constant 0 : i32
    return %c0_i32, %arg0 : i32, i32
  }
}

</mosaic_0001>

<llo_original>
// kernel: tpu_custom_call.1
$region0: #{tpu_custom_call.1}
  #allocation0 [shape = 'u32[]', space=smem, size = 0x4, offset = 0x4, fixed_abs, tag = 'smem constant byte address 0x4 - core index']
  #allocation1 [shape = 'u32[144,128]{1,0:T(1,128)}', space=vmem, size = 0x12000, scoped, tag = 'internal scratch']
  %s0 = inlined_call_operand.hbm [shape: f32[4,16,256], index: 0, kind: input, shape index: {}]
  %s1 = inlined_call_operand.vmem [shape: f32[4,16], index: 1, kind: input, shape index: {}]
  %s2 = inlined_call_operand.vmem [shape: f32[4,1], index: 2, kind: input, shape index: {}]
  %s3 = inlined_call_operand.hbm [shape: f32[3,256], index: 3, kind: output, shape index: {}]
  %s4 = sld [smem:[#allocation0]]
  $region49: #{tpu_custom_call.1} parent=0
    _
  %s6 = ssub.s32 1, %s4
  %s7 = scalar_select 0, %s6, %s4
  $region1: #{tpu_custom_call.1} parent=0
    #allocation2 [shape = 'u8[65536]{0}', space=vmem, size = 0x10000, scoped, tag = 'input window, operand 0']
    #allocation3 [shape = 's32[2]{0}', space=sflag, size = 0x8, scoped, tag = 'scoped memory for tpu_custom_call.1']
    #allocation4 [shape = 's32[2]{0}', space=sflag, size = 0x8, scoped, tag = 'scoped memory for tpu_custom_call.1']
    #allocation5 [shape = 'u8[4096]{0}', space=vmem, size = 0x1000, scoped, tag = 'output window, operand 0']
    %8 = vsyncpa [#allocation3], 0
    %s9 = scalar_lea.sflag [#allocation3], 1
    %10 = vsyncpa %s9, 0
    %11 = vsyncpa [#allocation4], 0
    %s12 = scalar_lea.sflag [#allocation4], 1
    %13 = vsyncpa %s12, 0
    loop: start=0, step=1, limit=4
    $region2: #{tpu_custom_call.1} parent=1 // loop_pre_header
      _
    $region3: #{tpu_custom_call.1} parent=1 // loop_header
      %s15 = sphi 0, %s19
      %p16 = scmp.ge.s32.totalorder %s15, 4
      %s25 = sphi 0, %s27
      %s28 = sphi 0, %s25
      %s29 = sphi 0, %s28
      %s45 = sphi 0, %s29
      %s49 = sphi 0, %s49
      %s51 = sphi 0, %s49
      %s52 = sphi 0, %s51
      %s66 = sphi 0, %s52
      %s70 = sphi 0, %s70
      %s72 = sphi 0, %s70
      %s73 = sphi 0, %s72
      %s87 = sphi 0, %s73
      %s93 = sphi 0, %s95
      %s96 = sphi 0, %s93
      %s97 = sphi 0, %s96
      %s113 = sphi 0, %s97
    $region4: #{tpu_custom_call.1} parent=1 // loop_header_branch
      %18 = sbr.rel (%p16) target = $region8
    $region5: #{tpu_custom_call.1} parent=1 // loop_body
      %s20 = ssub.s32 %s15, 1
      %s21 = ssub.s32 %s15, 2
      %s22 = sadd.s32 %s15, 1
      %s23 = ssub.s32 %s15, %s22
      %p24 = scmp.eq.s32.totalorder %s23, 0
      %s26 = sadd.s32 %s25, 1
      %s27 = scalar_select %p24, %s25, %s26
      %p30 = pneg %p24
      %p31 = scmp.eq.s32.totalorder %s15, 1
      %p32 = por %p30, %p31
      %p33 = scmp.ne.s32.totalorder %s25, %s28
      %p34 = scmp.eq.s32.totalorder %s15, 0
      %p35 = por %p33, %p34
      %p36 = scmp.ne.s32.totalorder %s25, %s28
      %p37 = scmp.eq.s32.totalorder %s20, 1
      %p38 = por %p36, %p37
      %p39 = scmp.ne.s32.totalorder %s28, %s29
      %p40 = scmp.eq.s32.totalorder %s20, 0
      %p41 = por %p39, %p40
      %p42 = scmp.ne.s32.totalorder %s28, %s29
      %p43 = scmp.eq.s32.totalorder %s21, 1
      %p44 = por %p42, %p43
      %p46 = scmp.ne.s32.totalorder %s29, %s45
      %p47 = scmp.eq.s32.totalorder %s21, 0
      %p48 = por %p46, %p47
      %s50 = sadd.s32 %s49, 1
      %p53 = scmp.eq.s32.totalorder %s15, 1
      %p54 = scmp.ne.s32.totalorder %s49, %s51
      %p55 = scmp.eq.s32.totalorder %s15, 0
      %p56 = por %p54, %p55
      %p57 = scmp.ne.s32.totalorder %s49, %s51
      %p58 = scmp.eq.s32.totalorder %s20, 1
      %p59 = por %p57, %p58
      %p60 = scmp.ne.s32.totalorder %s51, %s52
      %p61 = scmp.eq.s32.totalorder %s20, 0
      %p62 = por %p60, %p61
      %p63 = scmp.ne.s32.totalorder %s51, %s52
      %p64 = scmp.eq.s32.totalorder %s21, 1
      %p65 = por %p63, %p64
      %p67 = scmp.ne.s32.totalorder %s52, %s66
      %p68 = scmp.eq.s32.totalorder %s21, 0
      %p69 = por %p67, %p68
      %s71 = sadd.s32 %s70, 1
      %p74 = scmp.eq.s32.totalorder %s15, 1
      %p75 = scmp.ne.s32.totalorder %s70, %s72
      %p76 = scmp.eq.s32.totalorder %s15, 0
      %p77 = por %p75, %p76
      %p78 = scmp.ne.s32.totalorder %s70, %s72
      %p79 = scmp.eq.s32.totalorder %s20, 1
      %p80 = por %p78, %p79
      %p81 = scmp.ne.s32.totalorder %s72, %s73
      %p82 = scmp.eq.s32.totalorder %s20, 0
      %p83 = por %p81, %p82
      %p84 = scmp.ne.s32.totalorder %s72, %s73
      %p85 = scmp.eq.s32.totalorder %s21, 1
      %p86 = por %p84, %p85
      %p88 = scmp.ne.s32.totalorder %s73, %s87
      %p89 = scmp.eq.s32.totalorder %s21, 0
      %p90 = por %p88, %p89
      %s91 = ssub.s32 %s15, %s22
      %p92 = scmp.eq.s32.totalorder %s91, 0
      %s94 = sadd.s32 %s93, 1
      %s95 = scalar_select %p92, %s93, %s94
      %p98 = pneg %p92
      %p99 = scmp.eq.s32.totalorder %s15, 1
      %p100 = por %p98, %p99
      %p101 = scmp.ne.s32.totalorder %s93, %s96
      %p102 = scmp.eq.s32.totalorder %s15, 0
      %p103 = por %p101, %p102
      %p104 = scmp.ne.s32.totalorder %s93, %s96
      %p105 = scmp.eq.s32.totalorder %s20, 1
      %p106 = por %p104, %p105
      %p107 = scmp.ne.s32.totalorder %s96, %s97
      %p108 = scmp.eq.s32.totalorder %s20, 0
      %p109 = por %p107, %p108
      %p110 = scmp.ne.s32.totalorder %s96, %s97
      %p111 = scmp.eq.s32.totalorder %s21, 1
      %p112 = por %p110, %p111
      %p114 = scmp.ne.s32.totalorder %s97, %s113
      %p115 = scmp.eq.s32.totalorder %s21, 0
      %p116 = por %p114, %p115
      %p117 = scmp.le.s32.totalorder 1, %s15
      %p118 = scmp.lt.s32.totalorder %s15, 3
      %p119 = pnand %p117, %p118
      %p120 = pneg %p119
      // Predicated region
      $region9: #{tpu_custom_call.1} parent=5 // pred_check
        _
      $region10: #{tpu_custom_call.1} parent=5 // pred_check_branch
        %122 = sbr.rel (%p119) target = $region12
      $region11: #{tpu_custom_call.1} parent=5 // pred_region
        %s123 = ssub.s32 %s15, 1
        // Predicated region
        $region13: #{tpu_custom_call.1} parent=11 // pred_check
          %p124 = pneg %p62
        $region14: #{tpu_custom_call.1} parent=11 // pred_check_branch
          %126 = sbr.rel (%p124) target = $region16
        $region15: #{tpu_custom_call.1} parent=11 // pred_region
          _
        $region16: #{tpu_custom_call.1} parent=11 // pred_fallthru
          _
        // Predicated region
        $region17: #{tpu_custom_call.1} parent=11 // pred_check
          %p127 = pneg %p83
        $region18: #{tpu_custom_call.1} parent=11 // pred_check_branch
          %129 = sbr.rel (%p127) target = $region20
        $region19: #{tpu_custom_call.1} parent=11 // pred_region
          _
        $region20: #{tpu_custom_call.1} parent=11 // pred_fallthru
          _
      $region12: #{tpu_custom_call.1} parent=5 // pred_fallthru
        _
      %p130 = scmp.lt.s32.totalorder %s15, 2
      // Predicated region
      $region21: #{tpu_custom_call.1} parent=5 // pred_check
        %p131 = pneg %p130
      $region22: #{tpu_custom_call.1} parent=5 // pred_check_branch
        %133 = sbr.rel (%p131) target = $region24
      $region23: #{tpu_custom_call.1} parent=5 // pred_region
        // Predicated region
        $region25: #{tpu_custom_call.1} parent=23 // pred_check
          %p134 = pneg %p35
        $region26: #{tpu_custom_call.1} parent=23 // pred_check_branch
          %136 = sbr.rel (%p134) target = $region28
        $region27: #{tpu_custom_call.1} parent=23 // pred_region
          %s137 = sand.u32 %s25, 1
          %s138 = scalar_lea.sflag [#allocation3], %s137
          %s139 = sand.u32 %s25, 1
          %s140 = smul.addr %s139, 64
          %s141 = scalar_lea.vmem [#allocation2], %s140
          %s143 = ssub.s32 1024, 1024
          %144 = vsyncadd %s138, %s143
          %s145 = smul.addr %s15, 128
          %s146 = scalar_lea.hbm %s0, %s145
          %s147 = sshll.u32 %s141, 4
          %s148 = int_to_ptr.vmem [resolvable:$true] %s147
          %153 = dma.hbm_to_vmem [thread:$0]  %s146, 1024, %s148, %s138, 256, 128, 8
        $region28: #{tpu_custom_call.1} parent=23 // pred_fallthru
          _
      $region24: #{tpu_custom_call.1} parent=5 // pred_fallthru
        _
      %p154 = scmp.le.s32.totalorder 1, %s15
      %p155 = scmp.lt.s32.totalorder %s15, 3
      %p156 = pnand %p154, %p155
      %p157 = pneg %p156
      // Predicated region
      $region29: #{tpu_custom_call.1} parent=5 // pred_check
        _
      $region30: #{tpu_custom_call.1} parent=5 // pred_check_branch
        %159 = sbr.rel (%p156) target = $region32
      $region31: #{tpu_custom_call.1} parent=5 // pred_region
        %s160 = ssub.s32 %s15, 1
        %s161 = sand.u32 %s28, 1
        %s162 = scalar_lea.sflag [#allocation3], %s161
        %s163 = sand.u32 %s28, 1
        %s164 = smul.addr %s163, 64
        %s165 = scalar_lea.vmem [#allocation2], %s164
        // Predicated region
        $region33: #{tpu_custom_call.1} parent=31 // pred_check
          %p166 = pneg %p41
        $region34: #{tpu_custom_call.1} parent=31 // pred_check_branch
          %168 = sbr.rel (%p166) target = $region36
        $region35: #{tpu_custom_call.1} parent=31 // pred_region
          %169 = dma.done %s162, 1024
        $region36: #{tpu_custom_call.1} parent=31 // pred_fallthru
          _
        %s170 = sand.u32 %s28, 1
        %s171 = scalar_lea.sflag [#allocation3], %s170
        %s172 = sand.u32 %s28, 1
        %s173 = smul.addr %s172, 64
        %s174 = scalar_lea.vmem [#allocation2], %s173
        %p175 = pneg %p41
        %p176 = pneg %p38
        %p177 = pneg %p62
        %p178 = pneg %p59
        %p179 = pneg %p83
        %p180 = pneg %p80
        %p181 = pneg %p109
        %p182 = pneg %p106
        %s183 = sand.u32 %s96, 1
        %s184 = scalar_lea.sflag [#allocation4], %s183
        %s185 = sand.u32 %s96, 1
        %s186 = smul.addr %s185, 4
        %s187 = scalar_lea.vmem [#allocation5], %s186
        %v188 = vld [vmem:[%s1] sm:$0xf]
        %v189 = vld [vmem:[%s2] sm:$0xf]
        %191 = vset.pattern.permute.xlu0 0
        %192 = vperm.xlu0 %191, %v189
        %v193 = vpop.permute.xlu0 %192
        %v195 = vld [vmem:[%s165] sm:$0xff]
        %v196 = vld [vmem:[%s165 + $0x8] sm:$0xff]
        %vm197 = vcmask 130048
        %v199 = vsel %vm197, %v188, 0
        %201 = vmatprep.subr.mxu0 0.0
        %202 = vmatpush1.msra.mxu0 %v195
        %203 = vmatprep.subr.mxu0 0.0
        %204 = vmatpush1.msra.mxu0 %v196
        %205 = vmatprep.subr.mxu0 0.0
        %206 = vmatpush1.msra.mxu0 0.0
        %207 = vmatprep.subr.mxu0 0.0
        %208 = vmatpush1.msra.mxu0 0.0
        %209 = vmatprep.subr.mxu0 0.0
        %210 = vmatpush1.msra.mxu0 0.0
        %211 = vmatprep.subr.mxu0 0.0
        %212 = vmatpush1.msra.mxu0 0.0
        %213 = vmatprep.subr.mxu0 0.0
        %214 = vmatpush1.msra.mxu0 0.0
        %215 = vmatprep.subr.mxu0 0.0
        %216 = vmatpush1.msra.mxu0 0.0
        %217 = vmatprep.subr.mxu0 0.0
        %218 = vmatpush1.msra.mxu0 0.0
        %219 = vmatprep.subr.mxu0 0.0
        %220 = vmatpush1.msra.mxu0 0.0
        %221 = vmatprep.subr.mxu0 0.0
        %222 = vmatpush1.msra.mxu0 0.0
        %223 = vmatprep.subr.mxu0 0.0
        %224 = vmatpush1.msra.mxu0 0.0
        %225 = vmatprep.subr.mxu0 0.0
        %226 = vmatpush1.msra.mxu0 0.0
        %227 = vmatprep.subr.mxu0 0.0
        %228 = vmatpush1.msra.mxu0 0.0
        %229 = vmatprep.subr.mxu0 0.0
        %230 = vmatpush1.msra.mxu0 0.0
        %231 = vmatprep.subr.mxu0 0.0
        %232 = vmatpush1.msra.mxu0 0.0
        %233 = vmatprep.subr.mxu0 0.0
        %234 = vmatpush1.msra.mxu0 0.0
        %235 = vmatprep.subr.mxu0 0.0
        %236 = vmatpush1.msra.mxu0 0.0
        %237 = vmatprep.subr.mxu0 0.0
        %238 = vmatpush1.msra.mxu0 0.0
        %239 = vmatprep.subr.mxu0 0.0
        %240 = vmatpush1.msra.mxu0 0.0
        %241 = vmatprep.subr.mxu0 0.0
        %242 = vmatpush1.msra.mxu0 0.0
        %243 = vmatprep.subr.mxu0 0.0
        %244 = vmatpush1.msra.mxu0 0.0
        %245 = vmatprep.subr.mxu0 0.0
        %246 = vmatpush1.msra.mxu0 0.0
        %247 = vmatprep.subr.mxu0 0.0
        %248 = vmatpush1.msra.mxu0 0.0
        %249 = vmatprep.subr.mxu0 0.0
        %250 = vmatpush1.msra.mxu0 0.0
        %251 = vmatprep.subr.mxu0 0.0
        %252 = vmatpush1.msra.mxu0 0.0
        %253 = vmatprep.subr.mxu0 0.0
        %254 = vmatpush1.msra.mxu0 0.0
        %255 = vmatprep.subr.mxu0 0.0
        %256 = vmatpush1.msra.mxu0 0.0
        %257 = vmatprep.subr.mxu0 0.0
        %258 = vmatpush1.msra.mxu0 0.0
        %259 = vmatprep.subr.mxu0 0.0
        %260 = vmatpush1.msra.mxu0 0.0
        %261 = vmatprep.subr.mxu0 0.0
        %262 = vmatpush1.msra.mxu0 0.0
        %263 = vmatprep.subr.mxu0 0.0
        %264 = vmatpush1.msra.mxu0 0.0
        %265 = vmatprep.mubr.f32.mxu0 0.0
        %266 = vmatmul.mubr.f32.gmra.mrb[0].mxu0 %v199
        %v267 = vpop.f32.mrb[0].mxu0
        %v268 = vadd.f32 %v193, %v267
        %v269 = vpop.f32.mrb[0].mxu0
        %270 = vdwg.mxu0
        %s271 = scalar_lea.vmem %s165, 16 [#allocation2]
        %v272 = vld [vmem:[%s271] sm:$0xff]
        %v273 = vld [vmem:[%s271 + $0x8] sm:$0xff]
        %274 = vmatprep.subr.mxu0 0.0
        %275 = vmatpush1.msra.mxu0 %v272
        %276 = vmatprep.subr.mxu0 0.0
        %277 = vmatpush1.msra.mxu0 %v273
        %278 = vmatprep.subr.mxu0 0.0
        %279 = vmatpush1.msra.mxu0 0.0
        %280 = vmatprep.subr.mxu0 0.0
        %281 = vmatpush1.msra.mxu0 0.0
        %282 = vmatprep.subr.mxu0 0.0
        %283 = vmatpush1.msra.mxu0 0.0
        %284 = vmatprep.subr.mxu0 0.0
        %285 = vmatpush1.msra.mxu0 0.0
        %286 = vmatprep.subr.mxu0 0.0
        %287 = vmatpush1.msra.mxu0 0.0
        %288 = vmatprep.subr.mxu0 0.0
        %289 = vmatpush1.msra.mxu0 0.0
        %290 = vmatprep.subr.mxu0 0.0
        %291 = vmatpush1.msra.mxu0 0.0
        %292 = vmatprep.subr.mxu0 0.0
        %293 = vmatpush1.msra.mxu0 0.0
        %294 = vmatprep.subr.mxu0 0.0
        %295 = vmatpush1.msra.mxu0 0.0
        %296 = vmatprep.subr.mxu0 0.0
        %297 = vmatpush1.msra.mxu0 0.0
        %298 = vmatprep.subr.mxu0 0.0
        %299 = vmatpush1.msra.mxu0 0.0
        %300 = vmatprep.subr.mxu0 0.0
        %301 = vmatpush1.msra.mxu0 0.0
        %302 = vmatprep.subr.mxu0 0.0
        %303 = vmatpush1.msra.mxu0 0.0
        %304 = vmatprep.subr.mxu0 0.0
        %305 = vmatpush1.msra.mxu0 0.0
        %306 = vmatprep.subr.mxu0 0.0
        %307 = vmatpush1.msra.mxu0 0.0
        %308 = vmatprep.subr.mxu0 0.0
        %309 = vmatpush1.msra.mxu0 0.0
        %310 = vmatprep.subr.mxu0 0.0
        %311 = vmatpush1.msra.mxu0 0.0
        %312 = vmatprep.subr.mxu0 0.0
        %313 = vmatpush1.msra.mxu0 0.0
        %314 = vmatprep.subr.mxu0 0.0
        %315 = vmatpush1.msra.mxu0 0.0
        %316 = vmatprep.subr.mxu0 0.0
        %317 = vmatpush1.msra.mxu0 0.0
        %318 = vmatprep.subr.mxu0 0.0
        %319 = vmatpush1.msra.mxu0 0.0
        %320 = vmatprep.subr.mxu0 0.0
        %321 = vmatpush1.msra.mxu0 0.0
        %322 = vmatprep.subr.mxu0 0.0
        %323 = vmatpush1.msra.mxu0 0.0
        %324 = vmatprep.subr.mxu0 0.0
        %325 = vmatpush1.msra.mxu0 0.0
        %326 = vmatprep.subr.mxu0 0.0
        %327 = vmatpush1.msra.mxu0 0.0
        %328 = vmatprep.subr.mxu0 0.0
        %329 = vmatpush1.msra.mxu0 0.0
        %330 = vmatprep.subr.mxu0 0.0
        %331 = vmatpush1.msra.mxu0 0.0
        %332 = vmatprep.subr.mxu0 0.0
        %333 = vmatpush1.msra.mxu0 0.0
        %334 = vmatprep.subr.mxu0 0.0
        %335 = vmatpush1.msra.mxu0 0.0
        %336 = vmatprep.subr.mxu0 0.0
        %337 = vmatpush1.msra.mxu0 0.0
        %338 = vmatprep.mubr.f32.mxu0 0.0
        %339 = vmatmul.mubr.f32.gmra.mrb[0].mxu0 %v199
        %v340 = vpop.f32.mrb[0].mxu0
        %v341 = vadd.f32 %v193, %v340
        %v342 = vpop.f32.mrb[0].mxu0
        %343 = vdwg.mxu0
        %s344 = scalar_lea.vmem %s165, 32 [#allocation2]
        %v345 = vld [vmem:[%s344] sm:$0xff]
        %v346 = vld [vmem:[%s344 + $0x8] sm:$0xff]
        %347 = vmatprep.subr.mxu0 0.0
        %348 = vmatpush1.msra.mxu0 %v345
        %349 = vmatprep.subr.mxu0 0.0
        %350 = vmatpush1.msra.mxu0 %v346
        %351 = vmatprep.subr.mxu0 0.0
        %352 = vmatpush1.msra.mxu0 0.0
        %353 = vmatprep.subr.mxu0 0.0
        %354 = vmatpush1.msra.mxu0 0.0
        %355 = vmatprep.subr.mxu0 0.0
        %356 = vmatpush1.msra.mxu0 0.0
        %357 = vmatprep.subr.mxu0 0.0
        %358 = vmatpush1.msra.mxu0 0.0
        %359 = vmatprep.subr.mxu0 0.0
        %360 = vmatpush1.msra.mxu0 0.0
        %361 = vmatprep.subr.mxu0 0.0
        %362 = vmatpush1.msra.mxu0 0.0
        %363 = vmatprep.subr.mxu0 0.0
        %364 = vmatpush1.msra.mxu0 0.0
        %365 = vmatprep.subr.mxu0 0.0
        %366 = vmatpush1.msra.mxu0 0.0
        %367 = vmatprep.subr.mxu0 0.0
        %368 = vmatpush1.msra.mxu0 0.0
        %369 = vmatprep.subr.mxu0 0.0
        %370 = vmatpush1.msra.mxu0 0.0
        %371 = vmatprep.subr.mxu0 0.0
        %372 = vmatpush1.msra.mxu0 0.0
        %373 = vmatprep.subr.mxu0 0.0
        %374 = vmatpush1.msra.mxu0 0.0
        %375 = vmatprep.subr.mxu0 0.0
        %376 = vmatpush1.msra.mxu0 0.0
        %377 = vmatprep.subr.mxu0 0.0
        %378 = vmatpush1.msra.mxu0 0.0
        %379 = vmatprep.subr.mxu0 0.0
        %380 = vmatpush1.msra.mxu0 0.0
        %381 = vmatprep.subr.mxu0 0.0
        %382 = vmatpush1.msra.mxu0 0.0
        %383 = vmatprep.subr.mxu0 0.0
        %384 = vmatpush1.msra.mxu0 0.0
        %385 = vmatprep.subr.mxu0 0.0
        %386 = vmatpush1.msra.mxu0 0.0
        %387 = vmatprep.subr.mxu0 0.0
        %388 = vmatpush1.msra.mxu0 0.0
        %389 = vmatprep.subr.mxu0 0.0
        %390 = vmatpush1.msra.mxu0 0.0
        %391 = vmatprep.subr.mxu0 0.0
        %392 = vmatpush1.msra.mxu0 0.0
        %393 = vmatprep.subr.mxu0 0.0
        %394 = vmatpush1.msra.mxu0 0.0
        %395 = vmatprep.subr.mxu0 0.0
        %396 = vmatpush1.msra.mxu0 0.0
        %397 = vmatprep.subr.mxu0 0.0
        %398 = vmatpush1.msra.mxu0 0.0
        %399 = vmatprep.subr.mxu0 0.0
        %400 = vmatpush1.msra.mxu0 0.0
        %401 = vmatprep.subr.mxu0 0.0
        %402 = vmatpush1.msra.mxu0 0.0
        %403 = vmatprep.subr.mxu0 0.0
        %404 = vmatpush1.msra.mxu0 0.0
        %405 = vmatprep.subr.mxu0 0.0
        %406 = vmatpush1.msra.mxu0 0.0
        %407 = vmatprep.subr.mxu0 0.0
        %408 = vmatpush1.msra.mxu0 0.0
        %409 = vmatprep.subr.mxu0 0.0
        %410 = vmatpush1.msra.mxu0 0.0
        %411 = vmatprep.mubr.f32.mxu0 0.0
        %412 = vmatmul.mubr.f32.gmra.mrb[0].mxu0 %v199
        %v413 = vpop.f32.mrb[0].mxu0
        %v414 = vadd.f32 %v193, %v413
        %v415 = vpop.f32.mrb[0].mxu0
        %416 = vdwg.mxu0
        %s417 = scalar_lea.vmem %s165, 48 [#allocation2]
        %v418 = vld [vmem:[%s417] sm:$0xff]
        %v419 = vld [vmem:[%s417 + $0x8] sm:$0xff]
        %420 = vmatprep.subr.mxu0 0.0
        %421 = vmatpush1.msra.mxu0 %v418
        %422 = vmatprep.subr.mxu0 0.0
        %423 = vmatpush1.msra.mxu0 %v419
        %424 = vmatprep.subr.mxu0 0.0
        %425 = vmatpush1.msra.mxu0 0.0
        %426 = vmatprep.subr.mxu0 0.0
        %427 = vmatpush1.msra.mxu0 0.0
        %428 = vmatprep.subr.mxu0 0.0
        %429 = vmatpush1.msra.mxu0 0.0
        %430 = vmatprep.subr.mxu0 0.0
        %431 = vmatpush1.msra.mxu0 0.0
        %432 = vmatprep.subr.mxu0 0.0
        %433 = vmatpush1.msra.mxu0 0.0
        %434 = vmatprep.subr.mxu0 0.0
        %435 = vmatpush1.msra.mxu0 0.0
        %436 = vmatprep.subr.mxu0 0.0
        %437 = vmatpush1.msra.mxu0 0.0
        %438 = vmatprep.subr.mxu0 0.0
        %439 = vmatpush1.msra.mxu0 0.0
        %440 = vmatprep.subr.mxu0 0.0
        %441 = vmatpush1.msra.mxu0 0.0
        %442 = vmatprep.subr.mxu0 0.0
        %443 = vmatpush1.msra.mxu0 0.0
        %444 = vmatprep.subr.mxu0 0.0
        %445 = vmatpush1.msra.mxu0 0.0
        %446 = vmatprep.subr.mxu0 0.0
        %447 = vmatpush1.msra.mxu0 0.0
        %448 = vmatprep.subr.mxu0 0.0
        %449 = vmatpush1.msra.mxu0 0.0
        %450 = vmatprep.subr.mxu0 0.0
        %451 = vmatpush1.msra.mxu0 0.0
        %452 = vmatprep.subr.mxu0 0.0
        %453 = vmatpush1.msra.mxu0 0.0
        %454 = vmatprep.subr.mxu0 0.0
        %455 = vmatpush1.msra.mxu0 0.0
        %456 = vmatprep.subr.mxu0 0.0
        %457 = vmatpush1.msra.mxu0 0.0
        %458 = vmatprep.subr.mxu0 0.0
        %459 = vmatpush1.msra.mxu0 0.0
        %460 = vmatprep.subr.mxu0 0.0
        %461 = vmatpush1.msra.mxu0 0.0
        %462 = vmatprep.subr.mxu0 0.0
        %463 = vmatpush1.msra.mxu0 0.0
        %464 = vmatprep.subr.mxu0 0.0
        %465 = vmatpush1.msra.mxu0 0.0
        %466 = vmatprep.subr.mxu0 0.0
        %467 = vmatpush1.msra.mxu0 0.0
        %468 = vmatprep.subr.mxu0 0.0
        %469 = vmatpush1.msra.mxu0 0.0
        %470 = vmatprep.subr.mxu0 0.0
        %471 = vmatpush1.msra.mxu0 0.0
        %472 = vmatprep.subr.mxu0 0.0
        %473 = vmatpush1.msra.mxu0 0.0
        %474 = vmatprep.subr.mxu0 0.0
        %475 = vmatpush1.msra.mxu0 0.0
        %476 = vmatprep.subr.mxu0 0.0
        %477 = vmatpush1.msra.mxu0 0.0
        %478 = vmatprep.subr.mxu0 0.0
        %479 = vmatpush1.msra.mxu0 0.0
        %480 = vmatprep.subr.mxu0 0.0
        %481 = vmatpush1.msra.mxu0 0.0
        %482 = vmatprep.subr.mxu0 0.0
        %483 = vmatpush1.msra.mxu0 0.0
        %484 = vmatprep.mubr.f32.mxu0 0.0
        %485 = vmatmul.mubr.f32.gmra.mrb[0].mxu0 %v199
        %v486 = vpop.f32.mrb[0].mxu0
        %v487 = vadd.f32 %v193, %v486
        %v488 = vpop.f32.mrb[0].mxu0
        %489 = vdwg.mxu0
        %v490 = vxor.u32 %v268, 2147483648
        %v491 = vmul.f32 %v490, 1.442695
        %v492 = vpow.pop %v491
        %v493 = vadd.f32 %v492, 1.0
        %v494 = vrcp.pop %v493
        %v495 = vmul.f32 1.0, %v494
        %vm496 = vcmp.lt.f32.partialorder %v196, 1e-05
        %v498 = vrot.slane %v268, 4
        %v500 = vsel %vm496, 0.0, %v498
        %v501 = vmax.f32 %v500, 0.0
        %v502 = vsub.f32 %v273, %v196
        %v503 = vand.u32 2147483647, %v502
        %v504 = vsub.f32 0.0, %v503
        %v505 = vmul.f32 %v504, %v501
        %v506 = vmul.f32 %v505, 1.442695
        %v507 = vpow.pop %v506
        %v508 = vsub.f32 1.0, %v507
        %v509 = vlaneseq
        %v510 = vshrl.u32 %v509, 7
        %v511 = vsub.s32 7, %v510
        %v512 = vrot.slane %v508, %v511
        %v513 = vmul.f32 %v512, %v495
        %v514 = vadd.f32 %v513, 0.0
        %v515 = vsub.f32 1.0, %v508
        %v516 = vadd.f32 %v515, 1e-08
        %v517 = vxor.u32 %v341, 2147483648
        %v518 = vmul.f32 %v517, 1.442695
        %v519 = vpow.pop %v518
        %v520 = vadd.f32 %v519, 1.0
        %v521 = vrcp.pop %v520
        %v522 = vmul.f32 1.0, %v521
        %vm523 = vcmp.lt.f32.partialorder %v273, 1e-05
        %v525 = vrot.slane %v341, 4
        %v527 = vsel %vm523, 0.0, %v525
        %v528 = vmax.f32 %v527, 0.0
        %v529 = vsub.f32 %v346, %v273
        %v530 = vand.u32 2147483647, %v529
        %v531 = vsub.f32 0.0, %v530
        %v532 = vmul.f32 %v531, %v528
        %v533 = vmul.f32 %v532, 1.442695
        %v534 = vpow.pop %v533
        %v535 = vsub.f32 1.0, %v534
        %v536 = vmul.f32 %v535, %v516
        %v537 = vlaneseq
        %v538 = vshrl.u32 %v537, 7
        %v539 = vsub.s32 7, %v538
        %v540 = vrot.slane %v536, %v539
        %v541 = vmul.f32 %v540, %v522
        %v542 = vadd.f32 %v514, %v541
        %v543 = vsub.f32 1.0, %v535
        %v544 = vadd.f32 %v543, 1e-08
        %v545 = vmul.f32 %v516, %v544
        %v546 = vxor.u32 %v414, 2147483648
        %v547 = vmul.f32 %v546, 1.442695
        %v548 = vpow.pop %v547
        %v549 = vadd.f32 %v548, 1.0
        %v550 = vrcp.pop %v549
        %v551 = vmul.f32 1.0, %v550
        %vm552 = vcmp.lt.f32.partialorder %v346, 1e-05
        %v554 = vrot.slane %v414, 4
        %v556 = vsel %vm552, 0.0, %v554
        %v557 = vmax.f32 %v556, 0.0
        %v558 = vsub.f32 %v419, %v346
        %v559 = vand.u32 2147483647, %v558
        %v560 = vsub.f32 0.0, %v559
        %v561 = vmul.f32 %v560, %v557
        %v562 = vmul.f32 %v561, 1.442695
        %v563 = vpow.pop %v562
        %v564 = vsub.f32 1.0, %v563
        %v565 = vmul.f32 %v564, %v545
        %v566 = vlaneseq
        %v567 = vshrl.u32 %v566, 7
        %v568 = vsub.s32 7, %v567
        %v569 = vrot.slane %v565, %v568
        %v570 = vmul.f32 %v569, %v551
        %v571 = vadd.f32 %v542, %v570
        %v572 = vsub.f32 1.0, %v564
        %v573 = vadd.f32 %v572, 1e-08
        %v574 = vmul.f32 %v545, %v573
        %v575 = vxor.u32 %v487, 2147483648
        %v576 = vmul.f32 %v575, 1.442695
        %v577 = vpow.pop %v576
        %v578 = vadd.f32 %v577, 1.0
        %v579 = vrcp.pop %v578
        %v580 = vmul.f32 1.0, %v579
        %vm581 = vcmp.lt.f32.partialorder %v419, 1e-05
        %v583 = vrot.slane %v487, 4
        %v585 = vsel %vm581, 0.0, %v583
        %v586 = vmax.f32 %v585, 0.0
        %v587 = vmul.f32 %v586, -10000.0
        %v588 = vmul.f32 %v587, 1.442695
        %v589 = vpow.pop %v588
        %v590 = vsub.f32 1.0, %v589
        %v591 = vmul.f32 %v590, %v574
        %v592 = vlaneseq
        %v593 = vshrl.u32 %v592, 7
        %v594 = vsub.s32 7, %v593
        %v595 = vrot.slane %v591, %v594
        %v596 = vmul.f32 %v595, %v580
        %v597 = vadd.f32 %v571, %v596
        %598 = vst [vmem:[%s187] sm:$0x7] %v597
        %s599 = sand.u32 %s96, 1
        %s600 = scalar_lea.sflag [#allocation4], %s599
        %s601 = sand.u32 %s96, 1
        %s602 = smul.addr %s601, 4
        %s603 = scalar_lea.vmem [#allocation5], %s602
        // Predicated region
        $region37: #{tpu_custom_call.1} parent=31 // pred_check
          %p604 = pneg %p106
        $region38: #{tpu_custom_call.1} parent=31 // pred_check_branch
          %606 = sbr.rel (%p604) target = $region40
        $region39: #{tpu_custom_call.1} parent=31 // pred_region
          %s608 = ssub.s32 64, 64
          %609 = vsyncadd %s600, %s608
          %s610 = smul.addr %s20, 64
          %s611 = scalar_lea.hbm %s3, %s610
          %s613 = sshll.u32 %s603, 4
          %s614 = int_to_ptr.vmem [resolvable:$true] %s613
          %616 = dma.vmem_to_hbm [thread:$0]  %s614, 64, %s611, %s600
        $region40: #{tpu_custom_call.1} parent=31 // pred_fallthru
          _
      $region32: #{tpu_custom_call.1} parent=5 // pred_fallthru
        _
      %p617 = scmp.le.s32.totalorder 2, %s15
      // Predicated region
      $region41: #{tpu_custom_call.1} parent=5 // pred_check
        %p618 = pneg %p617
      $region42: #{tpu_custom_call.1} parent=5 // pred_check_branch
        %620 = sbr.rel (%p618) target = $region44
      $region43: #{tpu_custom_call.1} parent=5 // pred_region
        %s621 = ssub.s32 %s15, 2
        // Predicated region
        $region45: #{tpu_custom_call.1} parent=43 // pred_check
          %p622 = pneg %p112
        $region46: #{tpu_custom_call.1} parent=43 // pred_check_branch
          %624 = sbr.rel (%p622) target = $region48
        $region47: #{tpu_custom_call.1} parent=43 // pred_region
          %s625 = sand.u32 %s97, 1
          %s626 = scalar_lea.sflag [#allocation4], %s625
          %s627 = sand.u32 %s97, 1
          %s628 = smul.addr %s627, 4
          %s629 = scalar_lea.vmem [#allocation5], %s628
          %630 = dma.done %s626, 64
        $region48: #{tpu_custom_call.1} parent=43 // pred_fallthru
          _
      $region44: #{tpu_custom_call.1} parent=5 // pred_fallthru
        _
    $region6: #{tpu_custom_call.1} parent=1 // loop_footer
      %s19 = sadd.s32 1, %s15
    $region7: #{tpu_custom_call.1} parent=1 // loop_footer_branch
      %14 = sbr.rel target = $region3
    $region8: #{tpu_custom_call.1} parent=1 // loop_exit
      _
    %631 = vsyncpa [#allocation3], 1
    %s632 = scalar_lea.sflag [#allocation3], 1
    %633 = vsyncpa %s632, 1
    %634 = vsyncpa [#allocation4], 1
    %s635 = scalar_lea.sflag [#allocation4], 1
    %636 = vsyncpa %s635, 1

</llo_original>
